<compile_context>
chip_gen: v7x
topology: tpu7x:2x2x1
jax: 0.10.0
libtpu: 0.0.40
codegen_flags: <defaults>
</compile_context>

<pallas_src>
import functools

import jax
import jax.numpy as jnp
import numpy as np
from jax.experimental import pallas as pl
from jax.experimental.pallas import tpu as pltpu

LARGE_NEGATIVE_CONST = -1000000000.0  # kept for parity with the reference module


# ----------------------------------------------------------------------------
# Pallas kernel: one greedy decode step (embedding gather + vocab-tiled argmax)
# ----------------------------------------------------------------------------
def _greedy_step_kernel(
    # scalar prefetch (SMEM)
    model_ids_sm,   # (B,) int32: tokens fed to the decoder this step (DMA gather indices)
    # inputs
    embed_hbm,      # (V, H) f32, memory_space=pl.ANY — row-gathered by DMA
    w_ref,          # (H, TV) bf16  contiguous projection weight tile
    b_ref,          # (1, TV) f32   projection bias tile
    # outputs (per-core partials)
    pmax_ref,       # (B, 1) f32   block of the [NC, B, 1] per-core max
    parg_ref,       # (B, 1) int32 block of the [NC, B, 1] per-core argmax
    # scratch
    x_f32,          # (B, H) f32   gathered embedding rows
    x_bf16,         # (B, H) bf16  MXU input
    m_ref,          # (B, 1) f32   running max
    idx_ref,        # (B, 1) int32 running argmax
    sems,           # (B,) DMA semaphores
):
  B, H = x_f32.shape
  TV = w_ref.shape[1]
  c = pl.program_id(0)          # core's slice of the vocab (parallel axis)
  j = pl.program_id(1)          # vocab tile within this core's slice (arbitrary axis)
  nvp = pl.num_programs(1)

  # ---- first tile of this core's slice: init accumulators + DMA-gather embedding rows
  @pl.when(j == 0)
  def _init_and_gather():
    m_ref[...] = jnp.full((B, 1), -jnp.inf, jnp.float32)
    idx_ref[...] = jnp.zeros((B, 1), jnp.int32)
    # Embedding lookup as a DMA row gather (no one-hot matmul, no full-table stream).
    for b in range(B):
      pltpu.make_async_copy(
          embed_hbm.at[pl.ds(model_ids_sm[b], 1), :],
          x_f32.at[pl.ds(b, 1), :],
          sems.at[b]).start()
    for b in range(B):
      pltpu.make_async_copy(
          embed_hbm.at[pl.ds(model_ids_sm[b], 1), :],
          x_f32.at[pl.ds(b, 1), :],
          sems.at[b]).wait()
    x_bf16[...] = x_f32[...].astype(jnp.bfloat16)

  # ---- vocab-tiled projection: [B,H] x [H,TV] -> [B,TV] on the MXU (bf16 in, f32 acc)
  logits = jnp.dot(x_bf16[...], w_ref[...], preferred_element_type=jnp.float32)
  logits = logits + b_ref[...]
  # TODO(synk): logits_processor is the identity (empty LogitsProcessorList).

  # ---- running argmax over this core's tiles (first index of the max, like torch.argmax)
  tile_max = jnp.max(logits, axis=-1, keepdims=True)                      # [B,1]
  lane = jax.lax.broadcasted_iota(jnp.int32, logits.shape, 1)
  cand = jnp.where(logits == tile_max, lane, TV)
  tile_arg = jnp.min(cand, axis=-1, keepdims=True) + (c * nvp + j) * TV   # global vocab index
  better = tile_max > m_ref[...]          # strict > keeps the earliest tile on ties
  idx_ref[...] = jnp.where(better, tile_arg, idx_ref[...])
  m_ref[...] = jnp.where(better, tile_max, m_ref[...])

  # ---- last tile of this core's slice: emit per-core partials
  @pl.when(j == nvp - 1)
  def _emit():
    pmax_ref[...] = m_ref[...]
    parg_ref[...] = idx_ref[...]


def _pick_vocab_tile(vocab_size, hidden_size, batch_size, num_cores,
                     vmem_budget_bytes, max_tile=2048):
  """Largest TV (multiple of 128) s.t. V % TV == 0, tiles split evenly across cores,
  and the double-buffered weight/bias tiles + activation scratch fit the VMEM budget."""
  best = None
  tv = 128
  while tv <= min(vocab_size, max_tile):
    if vocab_size % tv == 0 and (vocab_size // tv) % num_cores == 0:
      need = 2 * (hidden_size * tv * 2 + 8 * tv * 4)          # double-buffered W (bf16) + bias
      need += batch_size * hidden_size * 6 + (2 << 20)        # activation scratch + headroom
      if need <= vmem_budget_bytes:
        best = tv
    tv += 128
  if best is None:
    tv = 128
    while tv <= vocab_size:
      if vocab_size % tv == 0 and (vocab_size // tv) % num_cores == 0:
        return tv
      tv += 128
    raise ValueError("vocab_size must be a multiple of 128 * num_cores")
  return best


def make_greedy_step_fn(batch_size, vocab_size, hidden_size, vocab_tile, num_cores,
                        vmem_limit_bytes):
  B, V, H, TV, NC = batch_size, vocab_size, hidden_size, vocab_tile, num_cores
  assert V % TV == 0 and TV % 128 == 0
  nv = V // TV
  assert nv % NC == 0, "vocab tiles must split evenly across cores"
  nvp = nv // NC
  assert B % 8 == 0 and H % 128 == 0

  grid_spec = pltpu.PrefetchScalarGridSpec(
      num_scalar_prefetch=1,                 # model_ids (B,) int32 in SMEM
      grid=(NC, nvp),                        # (core split, vocab tiles per core)
      in_specs=[
          pl.BlockSpec(memory_space=pl.ANY),                                  # embedding (HBM)
          pl.BlockSpec((None, H, TV), lambda c, j, m: (c * nvp + j, 0, 0)),   # weight tile
          pl.BlockSpec((None, 1, TV), lambda c, j, m: (c * nvp + j, 0, 0)),   # bias tile
      ],
      out_specs=[
          pl.BlockSpec((None, B, 1), lambda c, j, m: (c, 0, 0)),              # per-core max
          pl.BlockSpec((None, B, 1), lambda c, j, m: (c, 0, 0)),              # per-core argmax
      ],
      scratch_shapes=[
          pltpu.VMEM((B, H), jnp.float32),    # gathered embedding rows
          pltpu.VMEM((B, H), jnp.bfloat16),   # bf16 activation for the MXU
          pltpu.VMEM((B, 1), jnp.float32),    # running max
          pltpu.VMEM((B, 1), jnp.int32),      # running argmax
          pltpu.SemaphoreType.DMA((B,)),      # per-row gather semaphores
      ],
  )
  return pl.pallas_call(
      _greedy_step_kernel,
      grid_spec=grid_spec,
      out_shape=(
          jax.ShapeDtypeStruct((NC, B, 1), jnp.float32),
          jax.ShapeDtypeStruct((NC, B, 1), jnp.int32),
      ),
      compiler_params=pltpu.CompilerParams(
          # core axis is parallel (2x on v7x, serialized on v5e/v6e);
          # vocab axis carries the argmax accumulator.
          dimension_semantics=("parallel", "arbitrary"),
          vmem_limit_bytes=vmem_limit_bytes,
      ),
  )


# ----------------------------------------------------------------------------
# JAX glue: generation-step bookkeeping, cross-core combine, EOS carry, state update
# ----------------------------------------------------------------------------
def _host_step(gen_step, gen_tokens, input_ids, embed, w_tiles, b_tiles, *,
               step_fn, max_length, context_length, eos_token_id, pad_token_id, vocab_size):
  absolute_step = gen_step + context_length                  # [1] int32 (pre-mod, as in ref)
  gen_step_mod = gen_step % max_length
  begin = (gen_step_mod == 0).astype(jnp.int32)              # [1]
  gen_step_next = (1 - begin) * gen_step_mod + 1             # _reset_generation_step + increment

  B, S = gen_tokens.shape
  abs_col = absolute_step[0]
  col_iota = jax.lax.broadcasted_iota(jnp.int32, (B, S), 1)

  # reset_state(begin) then merge input_ids at column 0 (input_ids_mask logic)
  buf = jnp.where(begin[0] != 0, jnp.full_like(gen_tokens, pad_token_id), gen_tokens)
  generated = jnp.where(col_iota == 0, input_ids, buf)

  # model_input_ids = generated[:, absolute_step - 1]
  model_ids = jax.lax.dynamic_slice_in_dim(generated, abs_col - 1, 1, axis=1)[:, 0]
  model_ids = model_ids.astype(jnp.int32)
  safe_ids = jnp.clip(model_ids, 0, vocab_size - 1)          # guard the HBM DMA row gather

  # Pallas kernel: embedding gather + vocab-tiled projection + per-core argmax partials
  pmax, parg = step_fn(safe_ids, embed, w_tiles, b_tiles)

  # cross-core combine (first-max tie-break == lowest vocab index, matching torch.argmax)
  best_core = jnp.argmax(pmax, axis=0)                                     # [B,1]
  next_tok = jnp.take_along_axis(parg, best_core[None, :, :], axis=0)[0]   # [B,1] int32

  # once a sentence has emitted EOS (and we are past step 1), keep emitting EOS
  sentence_eos = jnp.logical_and(model_ids[:, None] == eos_token_id, (abs_col - 1) != 0)
  next_tok = jnp.where(sentence_eos, eos_token_id, next_tok).astype(jnp.int32)
  done = jnp.all(next_tok == eos_token_id)

  # generated_tokens <- dynamic_update(generated, next_tok, dim=1, index=absolute_step)
  new_gen = jnp.where(col_iota == abs_col, next_tok, generated)
  return next_tok, done, new_gen, gen_step_next


class OnDeviceGenerationModel:
  """num_beams == 1 (greedy search) on-device generation step backed by a Pallas TPU kernel."""

  def __init__(self, batch_size, max_length, vocab_size, hidden_size,
               eos_token_id, pad_token_id, key, vocab_tile=None, num_cores=2,
               vmem_budget_bytes=48 * 1024 * 1024):
    self.batch_size = batch_size
    self.max_length = max_length
    self.context_length = 1
    self.vocab_size = vocab_size
    self.hidden_size = hidden_size
    self.eos_token_id = eos_token_id
    self.pad_token_id = pad_token_id
    self.num_cores = num_cores

    if vocab_tile is None:
      vocab_tile = _pick_vocab_tile(vocab_size, hidden_size, batch_size, num_cores,
                                    vmem_budget_bytes)
    self.vocab_tile = vocab_tile
    nv = vocab_size // vocab_tile

    k1, k2 = jax.random.split(key)
    # Deterministic synthetic inner "user generation model":
    #   logits = embedding[token] @ W + b        (context_length == 1)
    self.embedding = (0.02 * jax.random.normal(k1, (vocab_size, hidden_size))).astype(jnp.float32)
    self.proj_full = (0.02 * jax.random.normal(k2, (hidden_size, vocab_size))).astype(jnp.bfloat16)
    self.bias_full = jnp.zeros((1, vocab_size), jnp.float32)
    # Per-tile contiguous layouts for full-burst weight DMA in the kernel.
    self.proj_tiles = jnp.transpose(
        self.proj_full.reshape(hidden_size, nv, vocab_tile), (1, 0, 2))    # [nv, H, TV] bf16
    self.bias_tiles = jnp.transpose(
        self.bias_full.reshape(1, nv, vocab_tile), (1, 0, 2))              # [nv, 1, TV] f32

    step_fn = make_greedy_step_fn(batch_size, vocab_size, hidden_size, vocab_tile,
                                  num_cores, vmem_budget_bytes)
    self._forward_fn = jax.jit(functools.partial(
        _host_step, step_fn=step_fn, max_length=max_length,
        context_length=self.context_length, eos_token_id=eos_token_id,
        pad_token_id=pad_token_id, vocab_size=vocab_size))

  def init_state(self):
    return {
        "generation_step": jnp.zeros((1,), jnp.int32),
        "generated_tokens": jnp.full((self.batch_size, self.max_length),
                                     self.pad_token_id, jnp.int32),
    }

  def forward(self, state, decoder_input_ids):
    assert decoder_input_ids.shape[-1] == 1
    next_tokens, done, new_gen, new_step = self._forward_fn(
        state["generation_step"], state["generated_tokens"],
        decoder_input_ids.astype(jnp.int32),
        self.embedding, self.proj_tiles, self.bias_tiles)
    new_state = {"generation_step": new_step, "generated_tokens": new_gen}
    outputs = {"generated_tokens": next_tokens, "done": done}
    return outputs, new_state


# ----------------------------------------------------------------------------
# Reference for one step (numpy + identical bf16/f32 matmul math) for correctness
# ----------------------------------------------------------------------------
def reference_step(model, state, input_ids):
  gen_step = int(np.asarray(state["generation_step"])[0])
  absolute_step = gen_step + model.context_length
  begin = int((gen_step % model.max_length) == 0)
  prev = np.asarray(state["generated_tokens"]).astype(np.int32)
  buf = np.where(begin, np.int32(model.pad_token_id), prev)
  generated = buf.copy()
  generated[:, 0] = np.asarray(input_ids)[:, 0]
  model_ids = generated[:, absolute_step - 1].astype(np.int32)
  x = np.asarray(model.embedding)[model_ids]                               # [B, H] f32
  logits = jnp.dot(jnp.asarray(x).astype(jnp.bfloat16), model.proj_full,
                   preferred_element_type=jnp.float32) + model.bias_full
  logits = np.asarray(logits)
  next_tok = np.argmax(logits, axis=-1).astype(np.int32)[:, None]
  sentence_eos = ((model_ids == model.eos_token_id) & (absolute_step - 1 != 0))
  sentence_eos = sentence_eos.astype(np.int32)[:, None]
  next_tok = sentence_eos * model.eos_token_id + (1 - sentence_eos) * next_tok
  new_gen = generated.copy()
  if absolute_step < model.max_length:
    new_gen[:, absolute_step] = next_tok[:, 0]
  done = bool(np.all(next_tok == model.eos_token_id))
  return next_tok, done, new_gen


def _run_and_check(model, input_ids, steps):
  state = model.init_state()
  for _ in range(steps):
    ref_tok, ref_done, ref_gen = reference_step(model, state, input_ids)
    outputs, state = model.forward(state, input_ids)
    jax.block_until_ready(outputs["generated_tokens"])
    np.testing.assert_array_equal(np.asarray(outputs["generated_tokens"]), ref_tok)
    assert bool(np.asarray(outputs["done"])) == ref_done
    np.testing.assert_array_equal(np.asarray(state["generated_tokens"]), ref_gen)
  return state


if __name__ == "__main__":
  B, S, V, H = 8, 16, 512, 256   # batch, max_length, vocab, hidden (small demo shapes)
  EOS, PAD = 2, 0

  key = jax.random.PRNGKey(0)
  k_model, k_model2, k_ids = jax.random.split(key, 3)

  # Initial decoder_input_ids: [B, 1] int32 (context length 1), avoid EOS/PAD.
  input_ids = jax.random.randint(k_ids, (B, 1), 3, V, dtype=jnp.int32)

  # Production-style config: vocab tile auto-derived from the VMEM budget (largest tile
  # that splits evenly across the 2-core vocab partition).
  model = OnDeviceGenerationModel(batch_size=B, max_length=S, vocab_size=V, hidden_size=H,
                                  eos_token_id=EOS, pad_token_id=PAD, key=k_model,
                                  num_cores=2)
  state = _run_and_check(model, input_ids, steps=3)

  # Small forced tile: exercises the multi-tile running-argmax accumulator path (nvp > 1).
  model_small = OnDeviceGenerationModel(batch_size=B, max_length=S, vocab_size=V,
                                        hidden_size=H, eos_token_id=EOS, pad_token_id=PAD,
                                        key=k_model2, vocab_tile=128, num_cores=2)
  _run_and_check(model_small, input_ids, steps=2)

  jax.block_until_ready(state["generated_tokens"])
  print("KERNEL_OK")
</pallas_src>

<mosaic_0001>
module attributes {stable_mosaic.version = 11 : i64} {
  func.func @_greedy_step_kernel(%arg0: i32, %arg1: i32, %arg2: memref<8xi32, #tpu.memory_space<smem>>, %arg3: memref<512x256xf32, #tpu.memory_space<any>>, %arg4: memref<1x256x256xbf16, #tpu.memory_space<vmem>>, %arg5: memref<1x1x256xf32, #tpu.memory_space<vmem>>, %arg6: memref<1x8x1xf32, #tpu.memory_space<vmem>>, %arg7: memref<1x8x1xi32, #tpu.memory_space<vmem>>, %arg8: memref<8x256xf32, #tpu.memory_space<vmem>>, %arg9: memref<8x256xbf16, #tpu.memory_space<vmem>>, %arg10: memref<8x1xf32, #tpu.memory_space<vmem>>, %arg11: memref<8x1xi32, #tpu.memory_space<vmem>>, %arg12: memref<8x!tpu.dma_semaphore, #tpu.memory_space<semaphore_mem>>) attributes {dimension_semantics = [#tpu.dimension_semantics<parallel>, #tpu.dimension_semantics<arbitrary>], iteration_bounds = array<i64: 2, 1>, scalar_prefetch = 1 : i64, scratch_operands = 5 : i64, tpu.core_type = #tpu.core_type<tc>, window_params = [{}, {transform_indices = @transform_1, window_bounds = array<i64: 1, 256, 256>}, {transform_indices = @transform_2, window_bounds = array<i64: 1, 1, 256>}, {transform_indices = @transform_3, window_bounds = array<i64: 1, 8, 1>}, {transform_indices = @transform_4, window_bounds = array<i64: 1, 8, 1>}]} {
    %c0_i32 = arith.constant 0 : i32
    %0 = arith.cmpi eq, %arg1, %c0_i32 : i32
    %1 = arith.extui %0 : i1 to i32
    %c0_i32_0 = arith.constant 0 : i32
    %2 = arith.cmpi ne, %1, %c0_i32_0 : i32
    scf.if %2 {
      %cst_23 = arith.constant 0xFF800000 : f32
      %36 = vector.broadcast %cst_23 : f32 to vector<8x1xf32>
      %c0_24 = arith.constant 0 : index
      %c0_25 = arith.constant 0 : index
      %37 = vector.load %arg10[%c0_24, %c0_25] : memref<8x1xf32, #tpu.memory_space<vmem>>, vector<8x1xf32>
      tpu.vector_store %arg10[%c0_24, %c0_25], %36 {strides = array<i32>} : memref<8x1xf32, #tpu.memory_space<vmem>>, vector<8x1xf32>,
      %c0_i32_26 = arith.constant 0 : i32
      %38 = vector.broadcast %c0_i32_26 : i32 to vector<8x1xi32>
      %c0_27 = arith.constant 0 : index
      %c0_28 = arith.constant 0 : index
      %39 = vector.load %arg11[%c0_27, %c0_28] : memref<8x1xi32, #tpu.memory_space<vmem>>, vector<8x1xi32>
      tpu.vector_store %arg11[%c0_27, %c0_28], %38 {strides = array<i32>} : memref<8x1xi32, #tpu.memory_space<vmem>>, vector<8x1xi32>,
      %c0_29 = arith.constant 0 : index
      %40 = memref.load %arg2[%c0_29] : memref<8xi32, #tpu.memory_space<smem>>
      %c0_i32_30 = arith.constant 0 : i32
      %c0_i32_31 = arith.constant 0 : i32
      %41 = tpu.memref_slice %arg3[%40, %c0_i32_31] : memref<512x256xf32, #tpu.memory_space<any>> -> memref<1x256xf32, #tpu.memory_space<any>>
      %c0_i32_32 = arith.constant 0 : i32
      %c0_i32_33 = arith.constant 0 : i32
      %42 = tpu.memref_slice %arg8[%c0_i32_32, %c0_i32_33] : memref<8x256xf32, #tpu.memory_space<vmem>> -> memref<1x256xf32, #tpu.memory_space<vmem>>
      %43 = tpu.memref_slice %arg12[%c0_i32_30] : memref<8x!tpu.dma_semaphore, #tpu.memory_space<semaphore_mem>> -> memref<1x!tpu.dma_semaphore, #tpu.memory_space<semaphore_mem>>
      %44 = tpu.memref_squeeze %43 : memref<1x!tpu.dma_semaphore, #tpu.memory_space<semaphore_mem>> -> memref<!tpu.dma_semaphore, #tpu.memory_space<semaphore_mem>>
      tpu.enqueue_dma source(%41 : memref<1x256xf32, #tpu.memory_space<any>>) target(%42 : memref<1x256xf32, #tpu.memory_space<vmem>>) target_semaphore(%44 : memref<!tpu.dma_semaphore, #tpu.memory_space<semaphore_mem>>)
      %c1 = arith.constant 1 : index
      %45 = memref.load %arg2[%c1] : memref<8xi32, #tpu.memory_space<smem>>
      %c1_i32_34 = arith.constant 1 : i32
      %c0_i32_35 = arith.constant 0 : i32
      %46 = tpu.memref_slice %arg3[%45, %c0_i32_35] : memref<512x256xf32, #tpu.memory_space<any>> -> memref<1x256xf32, #tpu.memory_space<any>>
      %c1_i32_36 = arith.constant 1 : i32
      %c0_i32_37 = arith.constant 0 : i32
      %47 = tpu.memref_slice %arg8[%c1_i32_36, %c0_i32_37] : memref<8x256xf32, #tpu.memory_space<vmem>> -> memref<1x256xf32, #tpu.memory_space<vmem>>
      %48 = tpu.memref_slice %arg12[%c1_i32_34] : memref<8x!tpu.dma_semaphore, #tpu.memory_space<semaphore_mem>> -> memref<1x!tpu.dma_semaphore, #tpu.memory_space<semaphore_mem>>
      %49 = tpu.memref_squeeze %48 : memref<1x!tpu.dma_semaphore, #tpu.memory_space<semaphore_mem>> -> memref<!tpu.dma_semaphore, #tpu.memory_space<semaphore_mem>>
      tpu.enqueue_dma source(%46 : memref<1x256xf32, #tpu.memory_space<any>>) target(%47 : memref<1x256xf32, #tpu.memory_space<vmem>>) target_semaphore(%49 : memref<!tpu.dma_semaphore, #tpu.memory_space<semaphore_mem>>)
      %c2 = arith.constant 2 : index
      %50 = memref.load %arg2[%c2] : memref<8xi32, #tpu.memory_space<smem>>
      %c2_i32 = arith.constant 2 : i32
      %c0_i32_38 = arith.constant 0 : i32
      %51 = tpu.memref_slice %arg3[%50, %c0_i32_38] : memref<512x256xf32, #tpu.memory_space<any>> -> memref<1x256xf32, #tpu.memory_space<any>>
      %c2_i32_39 = arith.constant 2 : i32
      %c0_i32_40 = arith.constant 0 : i32
      %52 = tpu.memref_slice %arg8[%c2_i32_39, %c0_i32_40] : memref<8x256xf32, #tpu.memory_space<vmem>> -> memref<1x256xf32, #tpu.memory_space<vmem>>
      %53 = tpu.memref_slice %arg12[%c2_i32] : memref<8x!tpu.dma_semaphore, #tpu.memory_space<semaphore_mem>> -> memref<1x!tpu.dma_semaphore, #tpu.memory_space<semaphore_mem>>
      %54 = tpu.memref_squeeze %53 : memref<1x!tpu.dma_semaphore, #tpu.memory_space<semaphore_mem>> -> memref<!tpu.dma_semaphore, #tpu.memory_space<semaphore_mem>>
      tpu.enqueue_dma source(%51 : memref<1x256xf32, #tpu.memory_space<any>>) target(%52 : memref<1x256xf32, #tpu.memory_space<vmem>>) target_semaphore(%54 : memref<!tpu.dma_semaphore, #tpu.memory_space<semaphore_mem>>)
      %c3 = arith.constant 3 : index
      %55 = memref.load %arg2[%c3] : memref<8xi32, #tpu.memory_space<smem>>
      %c3_i32 = arith.constant 3 : i32
      %c0_i32_41 = arith.constant 0 : i32
      %56 = tpu.memref_slice %arg3[%55, %c0_i32_41] : memref<512x256xf32, #tpu.memory_space<any>> -> memref<1x256xf32, #tpu.memory_space<any>>
      %c3_i32_42 = arith.constant 3 : i32
      %c0_i32_43 = arith.constant 0 : i32
      %57 = tpu.memref_slice %arg8[%c3_i32_42, %c0_i32_43] : memref<8x256xf32, #tpu.memory_space<vmem>> -> memref<1x256xf32, #tpu.memory_space<vmem>>
      %58 = tpu.memref_slice %arg12[%c3_i32] : memref<8x!tpu.dma_semaphore, #tpu.memory_space<semaphore_mem>> -> memref<1x!tpu.dma_semaphore, #tpu.memory_space<semaphore_mem>>
      %59 = tpu.memref_squeeze %58 : memref<1x!tpu.dma_semaphore, #tpu.memory_space<semaphore_mem>> -> memref<!tpu.dma_semaphore, #tpu.memory_space<semaphore_mem>>
      tpu.enqueue_dma source(%56 : memref<1x256xf32, #tpu.memory_space<any>>) target(%57 : memref<1x256xf32, #tpu.memory_space<vmem>>) target_semaphore(%59 : memref<!tpu.dma_semaphore, #tpu.memory_space<semaphore_mem>>)
      %c4 = arith.constant 4 : index
      %60 = memref.load %arg2[%c4] : memref<8xi32, #tpu.memory_space<smem>>
      %c4_i32 = arith.constant 4 : i32
      %c0_i32_44 = arith.constant 0 : i32
      %61 = tpu.memref_slice %arg3[%60, %c0_i32_44] : memref<512x256xf32, #tpu.memory_space<any>> -> memref<1x256xf32, #tpu.memory_space<any>>
      %c4_i32_45 = arith.constant 4 : i32
      %c0_i32_46 = arith.constant 0 : i32
      %62 = tpu.memref_slice %arg8[%c4_i32_45, %c0_i32_46] : memref<8x256xf32, #tpu.memory_space<vmem>> -> memref<1x256xf32, #tpu.memory_space<vmem>>
      %63 = tpu.memref_slice %arg12[%c4_i32] : memref<8x!tpu.dma_semaphore, #tpu.memory_space<semaphore_mem>> -> memref<1x!tpu.dma_semaphore, #tpu.memory_space<semaphore_mem>>
      %64 = tpu.memref_squeeze %63 : memref<1x!tpu.dma_semaphore, #tpu.memory_space<semaphore_mem>> -> memref<!tpu.dma_semaphore, #tpu.memory_space<semaphore_mem>>
      tpu.enqueue_dma source(%61 : memref<1x256xf32, #tpu.memory_space<any>>) target(%62 : memref<1x256xf32, #tpu.memory_space<vmem>>) target_semaphore(%64 : memref<!tpu.dma_semaphore, #tpu.memory_space<semaphore_mem>>)
      %c5 = arith.constant 5 : index
      %65 = memref.load %arg2[%c5] : memref<8xi32, #tpu.memory_space<smem>>
      %c5_i32 = arith.constant 5 : i32
      %c0_i32_47 = arith.constant 0 : i32
      %66 = tpu.memref_slice %arg3[%65, %c0_i32_47] : memref<512x256xf32, #tpu.memory_space<any>> -> memref<1x256xf32, #tpu.memory_space<any>>
      %c5_i32_48 = arith.constant 5 : i32
      %c0_i32_49 = arith.constant 0 : i32
      %67 = tpu.memref_slice %arg8[%c5_i32_48, %c0_i32_49] : memref<8x256xf32, #tpu.memory_space<vmem>> -> memref<1x256xf32, #tpu.memory_space<vmem>>
      %68 = tpu.memref_slice %arg12[%c5_i32] : memref<8x!tpu.dma_semaphore, #tpu.memory_space<semaphore_mem>> -> memref<1x!tpu.dma_semaphore, #tpu.memory_space<semaphore_mem>>
      %69 = tpu.memref_squeeze %68 : memref<1x!tpu.dma_semaphore, #tpu.memory_space<semaphore_mem>> -> memref<!tpu.dma_semaphore, #tpu.memory_space<semaphore_mem>>
      tpu.enqueue_dma source(%66 : memref<1x256xf32, #tpu.memory_space<any>>) target(%67 : memref<1x256xf32, #tpu.memory_space<vmem>>) target_semaphore(%69 : memref<!tpu.dma_semaphore, #tpu.memory_space<semaphore_mem>>)
      %c6 = arith.constant 6 : index
      %70 = memref.load %arg2[%c6] : memref<8xi32, #tpu.memory_space<smem>>
      %c6_i32 = arith.constant 6 : i32
      %c0_i32_50 = arith.constant 0 : i32
      %71 = tpu.memref_slice %arg3[%70, %c0_i32_50] : memref<512x256xf32, #tpu.memory_space<any>> -> memref<1x256xf32, #tpu.memory_space<any>>
      %c6_i32_51 = arith.constant 6 : i32
      %c0_i32_52 = arith.constant 0 : i32
      %72 = tpu.memref_slice %arg8[%c6_i32_51, %c0_i32_52] : memref<8x256xf32, #tpu.memory_space<vmem>> -> memref<1x256xf32, #tpu.memory_space<vmem>>
      %73 = tpu.memref_slice %arg12[%c6_i32] : memref<8x!tpu.dma_semaphore, #tpu.memory_space<semaphore_mem>> -> memref<1x!tpu.dma_semaphore, #tpu.memory_space<semaphore_mem>>
      %74 = tpu.memref_squeeze %73 : memref<1x!tpu.dma_semaphore, #tpu.memory_space<semaphore_mem>> -> memref<!tpu.dma_semaphore, #tpu.memory_space<semaphore_mem>>
      tpu.enqueue_dma source(%71 : memref<1x256xf32, #tpu.memory_space<any>>) target(%72 : memref<1x256xf32, #tpu.memory_space<vmem>>) target_semaphore(%74 : memref<!tpu.dma_semaphore, #tpu.memory_space<semaphore_mem>>)
      %c7 = arith.constant 7 : index
      %75 = memref.load %arg2[%c7] : memref<8xi32, #tpu.memory_space<smem>>
      %c7_i32 = arith.constant 7 : i32
      %c0_i32_53 = arith.constant 0 : i32
      %76 = tpu.memref_slice %arg3[%75, %c0_i32_53] : memref<512x256xf32, #tpu.memory_space<any>> -> memref<1x256xf32, #tpu.memory_space<any>>
      %c7_i32_54 = arith.constant 7 : i32
      %c0_i32_55 = arith.constant 0 : i32
      %77 = tpu.memref_slice %arg8[%c7_i32_54, %c0_i32_55] : memref<8x256xf32, #tpu.memory_space<vmem>> -> memref<1x256xf32, #tpu.memory_space<vmem>>
      %78 = tpu.memref_slice %arg12[%c7_i32] : memref<8x!tpu.dma_semaphore, #tpu.memory_space<semaphore_mem>> -> memref<1x!tpu.dma_semaphore, #tpu.memory_space<semaphore_mem>>
      %79 = tpu.memref_squeeze %78 : memref<1x!tpu.dma_semaphore, #tpu.memory_space<semaphore_mem>> -> memref<!tpu.dma_semaphore, #tpu.memory_space<semaphore_mem>>
      tpu.enqueue_dma source(%76 : memref<1x256xf32, #tpu.memory_space<any>>) target(%77 : memref<1x256xf32, #tpu.memory_space<vmem>>) target_semaphore(%79 : memref<!tpu.dma_semaphore, #tpu.memory_space<semaphore_mem>>)
      %c0_56 = arith.constant 0 : index
      %80 = memref.load %arg2[%c0_56] : memref<8xi32, #tpu.memory_space<smem>>
      %c0_i32_57 = arith.constant 0 : i32
      %c0_i32_58 = arith.constant 0 : i32
      %81 = tpu.memref_slice %arg3[%80, %c0_i32_58] : memref<512x256xf32, #tpu.memory_space<any>> -> memref<1x256xf32, #tpu.memory_space<any>>
      %c0_i32_59 = arith.constant 0 : i32
      %c0_i32_60 = arith.constant 0 : i32
      %82 = tpu.memref_slice %arg8[%c0_i32_59, %c0_i32_60] : memref<8x256xf32, #tpu.memory_space<vmem>> -> memref<1x256xf32, #tpu.memory_space<vmem>>
      %83 = tpu.memref_slice %arg12[%c0_i32_57] : memref<8x!tpu.dma_semaphore, #tpu.memory_space<semaphore_mem>> -> memref<1x!tpu.dma_semaphore, #tpu.memory_space<semaphore_mem>>
      %84 = tpu.memref_squeeze %83 : memref<1x!tpu.dma_semaphore, #tpu.memory_space<semaphore_mem>> -> memref<!tpu.dma_semaphore, #tpu.memory_space<semaphore_mem>>
      tpu.wait_dma2 semaphore(%84 : memref<!tpu.dma_semaphore, #tpu.memory_space<semaphore_mem>>) src(%81 : memref<1x256xf32, #tpu.memory_space<any>>) dst(%82 : memref<1x256xf32, #tpu.memory_space<vmem>>)
      %c1_61 = arith.constant 1 : index
      %85 = memref.load %arg2[%c1_61] : memref<8xi32, #tpu.memory_space<smem>>
      %c1_i32_62 = arith.constant 1 : i32
      %c0_i32_63 = arith.constant 0 : i32
      %86 = tpu.memref_slice %arg3[%85, %c0_i32_63] : memref<512x256xf32, #tpu.memory_space<any>> -> memref<1x256xf32, #tpu.memory_space<any>>
      %c1_i32_64 = arith.constant 1 : i32
      %c0_i32_65 = arith.constant 0 : i32
      %87 = tpu.memref_slice %arg8[%c1_i32_64, %c0_i32_65] : memref<8x256xf32, #tpu.memory_space<vmem>> -> memref<1x256xf32, #tpu.memory_space<vmem>>
      %88 = tpu.memref_slice %arg12[%c1_i32_62] : memref<8x!tpu.dma_semaphore, #tpu.memory_space<semaphore_mem>> -> memref<1x!tpu.dma_semaphore, #tpu.memory_space<semaphore_mem>>
      %89 = tpu.memref_squeeze %88 : memref<1x!tpu.dma_semaphore, #tpu.memory_space<semaphore_mem>> -> memref<!tpu.dma_semaphore, #tpu.memory_space<semaphore_mem>>
      tpu.wait_dma2 semaphore(%89 : memref<!tpu.dma_semaphore, #tpu.memory_space<semaphore_mem>>) src(%86 : memref<1x256xf32, #tpu.memory_space<any>>) dst(%87 : memref<1x256xf32, #tpu.memory_space<vmem>>)
      %c2_66 = arith.constant 2 : index
      %90 = memref.load %arg2[%c2_66] : memref<8xi32, #tpu.memory_space<smem>>
      %c2_i32_67 = arith.constant 2 : i32
      %c0_i32_68 = arith.constant 0 : i32
      %91 = tpu.memref_slice %arg3[%90, %c0_i32_68] : memref<512x256xf32, #tpu.memory_space<any>> -> memref<1x256xf32, #tpu.memory_space<any>>
      %c2_i32_69 = arith.constant 2 : i32
      %c0_i32_70 = arith.constant 0 : i32
      %92 = tpu.memref_slice %arg8[%c2_i32_69, %c0_i32_70] : memref<8x256xf32, #tpu.memory_space<vmem>> -> memref<1x256xf32, #tpu.memory_space<vmem>>
      %93 = tpu.memref_slice %arg12[%c2_i32_67] : memref<8x!tpu.dma_semaphore, #tpu.memory_space<semaphore_mem>> -> memref<1x!tpu.dma_semaphore, #tpu.memory_space<semaphore_mem>>
      %94 = tpu.memref_squeeze %93 : memref<1x!tpu.dma_semaphore, #tpu.memory_space<semaphore_mem>> -> memref<!tpu.dma_semaphore, #tpu.memory_space<semaphore_mem>>
      tpu.wait_dma2 semaphore(%94 : memref<!tpu.dma_semaphore, #tpu.memory_space<semaphore_mem>>) src(%91 : memref<1x256xf32, #tpu.memory_space<any>>) dst(%92 : memref<1x256xf32, #tpu.memory_space<vmem>>)
      %c3_71 = arith.constant 3 : index
      %95 = memref.load %arg2[%c3_71] : memref<8xi32, #tpu.memory_space<smem>>
      %c3_i32_72 = arith.constant 3 : i32
      %c0_i32_73 = arith.constant 0 : i32
      %96 = tpu.memref_slice %arg3[%95, %c0_i32_73] : memref<512x256xf32, #tpu.memory_space<any>> -> memref<1x256xf32, #tpu.memory_space<any>>
      %c3_i32_74 = arith.constant 3 : i32
      %c0_i32_75 = arith.constant 0 : i32
      %97 = tpu.memref_slice %arg8[%c3_i32_74, %c0_i32_75] : memref<8x256xf32, #tpu.memory_space<vmem>> -> memref<1x256xf32, #tpu.memory_space<vmem>>
      %98 = tpu.memref_slice %arg12[%c3_i32_72] : memref<8x!tpu.dma_semaphore, #tpu.memory_space<semaphore_mem>> -> memref<1x!tpu.dma_semaphore, #tpu.memory_space<semaphore_mem>>
      %99 = tpu.memref_squeeze %98 : memref<1x!tpu.dma_semaphore, #tpu.memory_space<semaphore_mem>> -> memref<!tpu.dma_semaphore, #tpu.memory_space<semaphore_mem>>
      tpu.wait_dma2 semaphore(%99 : memref<!tpu.dma_semaphore, #tpu.memory_space<semaphore_mem>>) src(%96 : memref<1x256xf32, #tpu.memory_space<any>>) dst(%97 : memref<1x256xf32, #tpu.memory_space<vmem>>)
      %c4_76 = arith.constant 4 : index
      %100 = memref.load %arg2[%c4_76] : memref<8xi32, #tpu.memory_space<smem>>
      %c4_i32_77 = arith.constant 4 : i32
      %c0_i32_78 = arith.constant 0 : i32
      %101 = tpu.memref_slice %arg3[%100, %c0_i32_78] : memref<512x256xf32, #tpu.memory_space<any>> -> memref<1x256xf32, #tpu.memory_space<any>>
      %c4_i32_79 = arith.constant 4 : i32
      %c0_i32_80 = arith.constant 0 : i32
      %102 = tpu.memref_slice %arg8[%c4_i32_79, %c0_i32_80] : memref<8x256xf32, #tpu.memory_space<vmem>> -> memref<1x256xf32, #tpu.memory_space<vmem>>
      %103 = tpu.memref_slice %arg12[%c4_i32_77] : memref<8x!tpu.dma_semaphore, #tpu.memory_space<semaphore_mem>> -> memref<1x!tpu.dma_semaphore, #tpu.memory_space<semaphore_mem>>
      %104 = tpu.memref_squeeze %103 : memref<1x!tpu.dma_semaphore, #tpu.memory_space<semaphore_mem>> -> memref<!tpu.dma_semaphore, #tpu.memory_space<semaphore_mem>>
      tpu.wait_dma2 semaphore(%104 : memref<!tpu.dma_semaphore, #tpu.memory_space<semaphore_mem>>) src(%101 : memref<1x256xf32, #tpu.memory_space<any>>) dst(%102 : memref<1x256xf32, #tpu.memory_space<vmem>>)
      %c5_81 = arith.constant 5 : index
      %105 = memref.load %arg2[%c5_81] : memref<8xi32, #tpu.memory_space<smem>>
      %c5_i32_82 = arith.constant 5 : i32
      %c0_i32_83 = arith.constant 0 : i32
      %106 = tpu.memref_slice %arg3[%105, %c0_i32_83] : memref<512x256xf32, #tpu.memory_space<any>> -> memref<1x256xf32, #tpu.memory_space<any>>
      %c5_i32_84 = arith.constant 5 : i32
      %c0_i32_85 = arith.constant 0 : i32
      %107 = tpu.memref_slice %arg8[%c5_i32_84, %c0_i32_85] : memref<8x256xf32, #tpu.memory_space<vmem>> -> memref<1x256xf32, #tpu.memory_space<vmem>>
      %108 = tpu.memref_slice %arg12[%c5_i32_82] : memref<8x!tpu.dma_semaphore, #tpu.memory_space<semaphore_mem>> -> memref<1x!tpu.dma_semaphore, #tpu.memory_space<semaphore_mem>>
      %109 = tpu.memref_squeeze %108 : memref<1x!tpu.dma_semaphore, #tpu.memory_space<semaphore_mem>> -> memref<!tpu.dma_semaphore, #tpu.memory_space<semaphore_mem>>
      tpu.wait_dma2 semaphore(%109 : memref<!tpu.dma_semaphore, #tpu.memory_space<semaphore_mem>>) src(%106 : memref<1x256xf32, #tpu.memory_space<any>>) dst(%107 : memref<1x256xf32, #tpu.memory_space<vmem>>)
      %c6_86 = arith.constant 6 : index
      %110 = memref.load %arg2[%c6_86] : memref<8xi32, #tpu.memory_space<smem>>
      %c6_i32_87 = arith.constant 6 : i32
      %c0_i32_88 = arith.constant 0 : i32
      %111 = tpu.memref_slice %arg3[%110, %c0_i32_88] : memref<512x256xf32, #tpu.memory_space<any>> -> memref<1x256xf32, #tpu.memory_space<any>>
      %c6_i32_89 = arith.constant 6 : i32
      %c0_i32_90 = arith.constant 0 : i32
      %112 = tpu.memref_slice %arg8[%c6_i32_89, %c0_i32_90] : memref<8x256xf32, #tpu.memory_space<vmem>> -> memref<1x256xf32, #tpu.memory_space<vmem>>
      %113 = tpu.memref_slice %arg12[%c6_i32_87] : memref<8x!tpu.dma_semaphore, #tpu.memory_space<semaphore_mem>> -> memref<1x!tpu.dma_semaphore, #tpu.memory_space<semaphore_mem>>
      %114 = tpu.memref_squeeze %113 : memref<1x!tpu.dma_semaphore, #tpu.memory_space<semaphore_mem>> -> memref<!tpu.dma_semaphore, #tpu.memory_space<semaphore_mem>>
      tpu.wait_dma2 semaphore(%114 : memref<!tpu.dma_semaphore, #tpu.memory_space<semaphore_mem>>) src(%111 : memref<1x256xf32, #tpu.memory_space<any>>) dst(%112 : memref<1x256xf32, #tpu.memory_space<vmem>>)
      %c7_91 = arith.constant 7 : index
      %115 = memref.load %arg2[%c7_91] : memref<8xi32, #tpu.memory_space<smem>>
      %c7_i32_92 = arith.constant 7 : i32
      %c0_i32_93 = arith.constant 0 : i32
      %116 = tpu.memref_slice %arg3[%115, %c0_i32_93] : memref<512x256xf32, #tpu.memory_space<any>> -> memref<1x256xf32, #tpu.memory_space<any>>
      %c7_i32_94 = arith.constant 7 : i32
      %c0_i32_95 = arith.constant 0 : i32
      %117 = tpu.memref_slice %arg8[%c7_i32_94, %c0_i32_95] : memref<8x256xf32, #tpu.memory_space<vmem>> -> memref<1x256xf32, #tpu.memory_space<vmem>>
      %118 = tpu.memref_slice %arg12[%c7_i32_92] : memref<8x!tpu.dma_semaphore, #tpu.memory_space<semaphore_mem>> -> memref<1x!tpu.dma_semaphore, #tpu.memory_space<semaphore_mem>>
      %119 = tpu.memref_squeeze %118 : memref<1x!tpu.dma_semaphore, #tpu.memory_space<semaphore_mem>> -> memref<!tpu.dma_semaphore, #tpu.memory_space<semaphore_mem>>
      tpu.wait_dma2 semaphore(%119 : memref<!tpu.dma_semaphore, #tpu.memory_space<semaphore_mem>>) src(%116 : memref<1x256xf32, #tpu.memory_space<any>>) dst(%117 : memref<1x256xf32, #tpu.memory_space<vmem>>)
      %c0_96 = arith.constant 0 : index
      %c0_97 = arith.constant 0 : index
      %120 = vector.load %arg8[%c0_96, %c0_97] : memref<8x256xf32, #tpu.memory_space<vmem>>, vector<8x256xf32>
      %121 = arith.truncf %120 : vector<8x256xf32> to vector<8x256xbf16>
      %c0_98 = arith.constant 0 : index
      %c0_99 = arith.constant 0 : index
      %122 = vector.load %arg9[%c0_98, %c0_99] : memref<8x256xbf16, #tpu.memory_space<vmem>>, vector<8x256xbf16>
      tpu.vector_store %arg9[%c0_98, %c0_99], %121 {strides = array<i32>} : memref<8x256xbf16, #tpu.memory_space<vmem>>, vector<8x256xbf16>,
    } else {
    }
    %c0 = arith.constant 0 : index
    %c0_1 = arith.constant 0 : index
    %3 = vector.load %arg9[%c0, %c0_1] : memref<8x256xbf16, #tpu.memory_space<vmem>>, vector<8x256xbf16>
    %c0_2 = arith.constant 0 : index
    %c0_3 = arith.constant 0 : index
    %c0_4 = arith.constant 0 : index
    %4 = vector.load %arg4[%c0_2, %c0_3, %c0_4] : memref<1x256x256xbf16, #tpu.memory_space<vmem>>, vector<1x256x256xbf16>
    %5 = vector.shape_cast %4 : vector<1x256x256xbf16> to vector<256x256xbf16>
    %cst = arith.constant dense<0.000000e+00> : vector<8x256xf32>
    %6 = tpu.matmul %3, %5, %cst {dimension_numbers = #tpu.dot_dimension_numbers<[1], [0], [0], [1], [0, 0, 1, 1], [], []>} : vector<8x256xbf16>, vector<256x256xbf16>, vector<8x256xf32> -> vector<8x256xf32>
    %c0_5 = arith.constant 0 : index
    %c0_6 = arith.constant 0 : index
    %c0_7 = arith.constant 0 : index
    %7 = vector.load %arg5[%c0_5, %c0_6, %c0_7] : memref<1x1x256xf32, #tpu.memory_space<vmem>>, vector<1x1x256xf32>
    %8 = vector.shape_cast %7 : vector<1x1x256xf32> to vector<1x256xf32>
    %9 = vector.broadcast %8 : vector<1x256xf32> to vector<8x256xf32>
    %10 = arith.addf %6, %9 : vector<8x256xf32>
    %cst_8 = arith.constant dense<0xFF800000> : vector<8xf32>
    %11 = vector.multi_reduction <maximumf>, %10, %cst_8 [1] : vector<8x256xf32> to vector<8xf32>
    %12 = vector.shape_cast %11 : vector<8xf32> to vector<8x1xf32>
    %13 = tpu.iota {dimensions = array<i32: 1>} : vector<8x256xi32>
    %14 = vector.broadcast %12 : vector<8x1xf32> to vector<8x256xf32>
    %15 = arith.cmpf oeq, %10, %14 : vector<8x256xf32>
    %c256_i32 = arith.constant 256 : i32
    %16 = vector.broadcast %c256_i32 : i32 to vector<8x256xi32>
    %17 = arith.select %15, %13, %16 : vector<8x256xi1>, vector<8x256xi32>
    %cst_9 = arith.constant dense<2147483647> : vector<8xi32>
    %18 = vector.multi_reduction <minsi>, %17, %cst_9 [1] : vector<8x256xi32> to vector<8xi32>
    %19 = vector.shape_cast %18 : vector<8xi32> to vector<8x1xi32>
    %c1_i32 = arith.constant 1 : i32
    %20 = arith.muli %arg0, %c1_i32 : i32
    %21 = arith.addi %20, %arg1 : i32
    %c256_i32_10 = arith.constant 256 : i32
    %22 = arith.muli %21, %c256_i32_10 : i32
    %23 = vector.broadcast %22 : i32 to vector<8x1xi32>
    %24 = arith.addi %19, %23 : vector<8x1xi32>
    %c0_11 = arith.constant 0 : index
    %c0_12 = arith.constant 0 : index
    %25 = vector.load %arg10[%c0_11, %c0_12] : memref<8x1xf32, #tpu.memory_space<vmem>>, vector<8x1xf32>
    %26 = arith.cmpf ogt, %12, %25 : vector<8x1xf32>
    %c0_13 = arith.constant 0 : index
    %c0_14 = arith.constant 0 : index
    %27 = vector.load %arg11[%c0_13, %c0_14] : memref<8x1xi32, #tpu.memory_space<vmem>>, vector<8x1xi32>
    %28 = arith.select %26, %24, %27 : vector<8x1xi1>, vector<8x1xi32>
    %c0_15 = arith.constant 0 : index
    %c0_16 = arith.constant 0 : index
    %29 = vector.load %arg11[%c0_15, %c0_16] : memref<8x1xi32, #tpu.memory_space<vmem>>, vector<8x1xi32>
    tpu.vector_store %arg11[%c0_15, %c0_16], %28 {strides = array<i32>} : memref<8x1xi32, #tpu.memory_space<vmem>>, vector<8x1xi32>,
    %c0_17 = arith.constant 0 : index
    %c0_18 = arith.constant 0 : index
    %30 = vector.load %arg10[%c0_17, %c0_18] : memref<8x1xf32, #tpu.memory_space<vmem>>, vector<8x1xf32>
    %31 = arith.select %26, %12, %30 : vector<8x1xi1>, vector<8x1xf32>
    %c0_19 = arith.constant 0 : index
    %c0_20 = arith.constant 0 : index
    %32 = vector.load %arg10[%c0_19, %c0_20] : memref<8x1xf32, #tpu.memory_space<vmem>>, vector<8x1xf32>
    tpu.vector_store %arg10[%c0_19, %c0_20], %31 {strides = array<i32>} : memref<8x1xf32, #tpu.memory_space<vmem>>, vector<8x1xf32>,
    %c0_i32_21 = arith.constant 0 : i32
    %33 = arith.cmpi eq, %arg1, %c0_i32_21 : i32
    %34 = arith.extui %33 : i1 to i32
    %c0_i32_22 = arith.constant 0 : i32
    %35 = arith.cmpi ne, %34, %c0_i32_22 : i32
    scf.if %35 {
      %c0_23 = arith.constant 0 : index
      %c0_24 = arith.constant 0 : index
      %36 = vector.load %arg10[%c0_23, %c0_24] : memref<8x1xf32, #tpu.memory_space<vmem>>, vector<8x1xf32>
      %c0_25 = arith.constant 0 : index
      %c0_26 = arith.constant 0 : index
      %c0_27 = arith.constant 0 : index
      %37 = vector.load %arg6[%c0_25, %c0_26, %c0_27] : memref<1x8x1xf32, #tpu.memory_space<vmem>>, vector<1x8x1xf32>
      %38 = vector.shape_cast %37 : vector<1x8x1xf32> to vector<8x1xf32>
      %39 = vector.shape_cast %36 : vector<8x1xf32> to vector<1x8x1xf32>
      tpu.vector_store %arg6[%c0_25, %c0_26, %c0_27], %39 {strides = array<i32>} : memref<1x8x1xf32, #tpu.memory_space<vmem>>, vector<1x8x1xf32>,
      %c0_28 = arith.constant 0 : index
      %c0_29 = arith.constant 0 : index
      %40 = vector.load %arg11[%c0_28, %c0_29] : memref<8x1xi32, #tpu.memory_space<vmem>>, vector<8x1xi32>
      %c0_30 = arith.constant 0 : index
      %c0_31 = arith.constant 0 : index
      %c0_32 = arith.constant 0 : index
      %41 = vector.load %arg7[%c0_30, %c0_31, %c0_32] : memref<1x8x1xi32, #tpu.memory_space<vmem>>, vector<1x8x1xi32>
      %42 = vector.shape_cast %41 : vector<1x8x1xi32> to vector<8x1xi32>
      %43 = vector.shape_cast %40 : vector<8x1xi32> to vector<1x8x1xi32>
      tpu.vector_store %arg7[%c0_30, %c0_31, %c0_32], %43 {strides = array<i32>} : memref<1x8x1xi32, #tpu.memory_space<vmem>>, vector<1x8x1xi32>,
    } else {
    }
    return
  }
  func.func @transform_1(%arg0: i32, %arg1: i32, %arg2: memref<8xi32, #tpu.memory_space<smem>>) -> (i32, i32, i32) {
    %c1_i32 = arith.constant 1 : i32
    %0 = arith.muli %arg0, %c1_i32 : i32
    %1 = arith.addi %0, %arg1 : i32
    %c0_i32 = arith.constant 0 : i32
    %c0_i32_0 = arith.constant 0 : i32
    %c0_i32_1 = arith.constant 0 : i32
    return %1, %c0_i32, %c0_i32_0 : i32, i32, i32
  }
  func.func @transform_2(%arg0: i32, %arg1: i32, %arg2: memref<8xi32, #tpu.memory_space<smem>>) -> (i32, i32, i32) {
    %c1_i32 = arith.constant 1 : i32
    %0 = arith.muli %arg0, %c1_i32 : i32
    %1 = arith.addi %0, %arg1 : i32
    %c0_i32 = arith.constant 0 : i32
    %c0_i32_0 = arith.constant 0 : i32
    %c0_i32_1 = arith.constant 0 : i32
    return %1, %c0_i32, %c0_i32_0 : i32, i32, i32
  }
  func.func @transform_3(%arg0: i32, %arg1: i32, %arg2: memref<8xi32, #tpu.memory_space<smem>>) -> (i32, i32, i32) {
    %c0_i32 = arith.constant 0 : i32
    %c0_i32_0 = arith.constant 0 : i32
    %c0_i32_1 = arith.constant 0 : i32
    return %arg0, %c0_i32, %c0_i32_0 : i32, i32, i32
  }
  func.func @transform_4(%arg0: i32, %arg1: i32, %arg2: memref<8xi32, #tpu.memory_space<smem>>) -> (i32, i32, i32) {
    %c0_i32 = arith.constant 0 : i32
    %c0_i32_0 = arith.constant 0 : i32
    %c0_i32_1 = arith.constant 0 : i32
    return %arg0, %c0_i32, %c0_i32_0 : i32, i32, i32
  }
}

</mosaic_0001>

<llo_original>
// kernel: _host_step.1
$region0: #{_host_step.1}
  #allocation0 [shape = 'u32[]', space=smem, size = 0x4, offset = 0x4, fixed_abs, tag = 'smem constant byte address 0x4 - core index']
  #allocation1 [shape = 'u32[144,128]{1,0:T(1,128)}', space=vmem, size = 0x12000, scoped, tag = 'internal scratch']
  #allocation2 [shape = 'f32[8,256]{1,0:T(8,128)}', space=vmem, size = 0x2000, scoped, tag = 'scratch operand']
  #allocation3 [shape = 'bf16[8,256]{1,0:T(8,128)(2,1)}', space=vmem, size = 0x1000, scoped, tag = 'scratch operand']
  #allocation4 [shape = 'f32[8,1]{1,0:T(8,128)}', space=vmem, size = 0x1000, scoped, tag = 'scratch operand']
  #allocation5 [shape = 's32[8,1]{1,0:T(8,128)}', space=vmem, size = 0x1000, scoped, tag = 'scratch operand']
  #allocation6 [shape = 's32[8]{0}', space=sflag, size = 0x20, scoped, tag = 'scratch operand']
  #allocation7 [shape = 's32[1]{0}', space=sflag, size = 0x4, scoped, tag = 'scoped memory for _host_step.1']
  #allocation8 [shape = 'u8[512]{0}', space=smem, size = 0x200, scoped, tag = 'prefetched SMEM operand 0']
  #allocation11 [shape = 's32[]', space=sflag, size = 0x4, offset = 0, fixed_abs, tag = 'sflag constant byte address 0x0 - dummy sync flag']
  #allocation12 [shape = 's32[]', space=sflag, size = 0x4, offset = 0, fixed_abs, tag = 'sflag constant byte address 0x0 - dummy sync flag']
  #allocation13 [shape = 's32[]', space=sflag, size = 0x4, offset = 0, fixed_abs, tag = 'sflag constant byte address 0x0 - dummy sync flag']
  #allocation14 [shape = 's32[]', space=sflag, size = 0x4, offset = 0, fixed_abs, tag = 'sflag constant byte address 0x0 - dummy sync flag']
  #allocation15 [shape = 's32[]', space=sflag, size = 0x4, offset = 0, fixed_abs, tag = 'sflag constant byte address 0x0 - dummy sync flag']
  #allocation16 [shape = 's32[]', space=sflag, size = 0x4, offset = 0, fixed_abs, tag = 'sflag constant byte address 0x0 - dummy sync flag']
  #allocation17 [shape = 's32[]', space=sflag, size = 0x4, offset = 0, fixed_abs, tag = 'sflag constant byte address 0x0 - dummy sync flag']
  #allocation18 [shape = 's32[]', space=sflag, size = 0x4, offset = 0, fixed_abs, tag = 'sflag constant byte address 0x0 - dummy sync flag']
  %s0 = inlined_call_operand.vmem [shape: s32[8], index: 0, kind: input, shape index: {}]
  %s1 = inlined_call_operand.hbm [shape: f32[512,256], index: 1, kind: input, shape index: {}]
  %s2 = inlined_call_operand.hbm [shape: bf16[2,256,256], index: 2, kind: input, shape index: {}]
  %s3 = inlined_call_operand.vmem [shape: f32[2,1,256], index: 3, kind: input, shape index: {}]
  %s4 = inlined_call_operand.vmem [shape: f32[2,8,1], index: 4, kind: output, shape index: {0}]
  %s5 = inlined_call_operand.vmem [shape: s32[2,8,1], index: 5, kind: output, shape index: {1}]
  %6 = xla_tuple %s4, %s5
  %s7 = sld [smem:[#allocation0]]
  $region61: #{_host_step.1} parent=0
    _
  %s9 = ssub.s32 1, %s7
  %s10 = scalar_select 0, %s9, %s7
  %s11 = sshll.u32 %s0, 4
  %s12 = int_to_ptr.vmem [resolvable:$true] %s11
  %14 = dma.vmem_to_smem %s12, 16, [#allocation8], [#allocation7]
  %15 = dma.done [#allocation7], 16
  %16 = sfence
  $region1: #{_host_step.1} parent=0
    #allocation9 [shape = 'u8[262144]{0}', space=vmem, size = 0x40000, scoped, tag = 'input window, operand 2']
    #allocation10 [shape = 's32[2]{0}', space=sflag, size = 0x8, scoped, tag = 'scoped memory for _host_step.1']
    %17 = vsyncpa [#allocation10], 0
    %s18 = scalar_lea.sflag [#allocation10], 1
    %19 = vsyncpa %s18, 0
    loop: start=0, step=1, limit=4
    $region2: #{_host_step.1} parent=1 // loop_pre_header
      _
    $region3: #{_host_step.1} parent=1 // loop_header
      %s21 = sphi 0, %s25
      %p22 = scmp.ge.s32.totalorder %s21, 4
      %s28 = sphi 0, %s40
      %s29 = sphi 0, %s36
      %s30 = sphi 0, %s28
      %s31 = sphi 0, %s29
      %s32 = sphi 0, %s30
      %s33 = sphi 0, %s31
      %s45 = sphi 0, %s47
      %s48 = sphi 0, %s45
      %s49 = sphi 0, %s48
      %s65 = sphi 0, %s49
      %s73 = sphi 0, %s75
      %s76 = sphi 0, %s73
      %s77 = sphi 0, %s76
      %s93 = sphi 0, %s77
      %s99 = sphi 0, %s101
      %s102 = sphi 0, %s99
      %s103 = sphi 0, %s102
      %s119 = sphi 0, %s103
      %s125 = sphi 0, %s127
      %s128 = sphi 0, %s125
      %s129 = sphi 0, %s128
      %s145 = sphi 0, %s129
    $region4: #{_host_step.1} parent=1 // loop_header_branch
      %24 = sbr.rel (%p22) target = $region8
    $region5: #{_host_step.1} parent=1 // loop_body
      %s26 = ssub.s32 %s21, 1
      %s27 = ssub.s32 %s21, 2
      %s34 = sadd.s32 1, %s29
      %p35 = scmp.ge.s32.totalorder %s34, 1
      %s36 = scalar_select %p35, 0, %s34
      %s37 = sadd.s32 1, %s28
      %s38 = scalar_select %p35, %s37, %s28
      %p39 = scmp.ge.s32.totalorder %s38, 2
      %s40 = scalar_select %p39, 0, %s38
      %s41 = sadd.s32 %s28, %s29
      %s42 = sadd.s32 %s40, %s36
      %s43 = ssub.s32 %s41, %s42
      %p44 = scmp.eq.s32.totalorder %s43, 0
      %s46 = sadd.s32 %s45, 1
      %s47 = scalar_select %p44, %s45, %s46
      %p50 = pneg %p44
      %p51 = scmp.eq.s32.totalorder %s21, 1
      %p52 = por %p50, %p51
      %p53 = scmp.ne.s32.totalorder %s45, %s48
      %p54 = scmp.eq.s32.totalorder %s21, 0
      %p55 = por %p53, %p54
      %p56 = scmp.ne.s32.totalorder %s45, %s48
      %p57 = scmp.eq.s32.totalorder %s26, 1
      %p58 = por %p56, %p57
      %p59 = scmp.ne.s32.totalorder %s48, %s49
      %p60 = scmp.eq.s32.totalorder %s26, 0
      %p61 = por %p59, %p60
      %p62 = scmp.ne.s32.totalorder %s48, %s49
      %p63 = scmp.eq.s32.totalorder %s27, 1
      %p64 = por %p62, %p63
      %p66 = scmp.ne.s32.totalorder %s49, %s65
      %p67 = scmp.eq.s32.totalorder %s27, 0
      %p68 = por %p66, %p67
      %s69 = sadd.s32 %s28, %s29
      %s70 = sadd.s32 %s40, %s36
      %s71 = ssub.s32 %s69, %s70
      %p72 = scmp.eq.s32.totalorder %s71, 0
      %s74 = sadd.s32 %s73, 1
      %s75 = scalar_select %p72, %s73, %s74
      %p78 = pneg %p72
      %p79 = scmp.eq.s32.totalorder %s21, 1
      %p80 = por %p78, %p79
      %p81 = scmp.ne.s32.totalorder %s73, %s76
      %p82 = scmp.eq.s32.totalorder %s21, 0
      %p83 = por %p81, %p82
      %p84 = scmp.ne.s32.totalorder %s73, %s76
      %p85 = scmp.eq.s32.totalorder %s26, 1
      %p86 = por %p84, %p85
      %p87 = scmp.ne.s32.totalorder %s76, %s77
      %p88 = scmp.eq.s32.totalorder %s26, 0
      %p89 = por %p87, %p88
      %p90 = scmp.ne.s32.totalorder %s76, %s77
      %p91 = scmp.eq.s32.totalorder %s27, 1
      %p92 = por %p90, %p91
      %p94 = scmp.ne.s32.totalorder %s77, %s93
      %p95 = scmp.eq.s32.totalorder %s27, 0
      %p96 = por %p94, %p95
      %s97 = ssub.s32 %s28, %s40
      %p98 = scmp.eq.s32.totalorder %s97, 0
      %s100 = sadd.s32 %s99, 1
      %s101 = scalar_select %p98, %s99, %s100
      %p104 = pneg %p98
      %p105 = scmp.eq.s32.totalorder %s21, 1
      %p106 = por %p104, %p105
      %p107 = scmp.ne.s32.totalorder %s99, %s102
      %p108 = scmp.eq.s32.totalorder %s21, 0
      %p109 = por %p107, %p108
      %p110 = scmp.ne.s32.totalorder %s99, %s102
      %p111 = scmp.eq.s32.totalorder %s26, 1
      %p112 = por %p110, %p111
      %p113 = scmp.ne.s32.totalorder %s102, %s103
      %p114 = scmp.eq.s32.totalorder %s26, 0
      %p115 = por %p113, %p114
      %p116 = scmp.ne.s32.totalorder %s102, %s103
      %p117 = scmp.eq.s32.totalorder %s27, 1
      %p118 = por %p116, %p117
      %p120 = scmp.ne.s32.totalorder %s103, %s119
      %p121 = scmp.eq.s32.totalorder %s27, 0
      %p122 = por %p120, %p121
      %s123 = ssub.s32 %s28, %s40
      %p124 = scmp.eq.s32.totalorder %s123, 0
      %s126 = sadd.s32 %s125, 1
      %s127 = scalar_select %p124, %s125, %s126
      %p130 = pneg %p124
      %p131 = scmp.eq.s32.totalorder %s21, 1
      %p132 = por %p130, %p131
      %p133 = scmp.ne.s32.totalorder %s125, %s128
      %p134 = scmp.eq.s32.totalorder %s21, 0
      %p135 = por %p133, %p134
      %p136 = scmp.ne.s32.totalorder %s125, %s128
      %p137 = scmp.eq.s32.totalorder %s26, 1
      %p138 = por %p136, %p137
      %p139 = scmp.ne.s32.totalorder %s128, %s129
      %p140 = scmp.eq.s32.totalorder %s26, 0
      %p141 = por %p139, %p140
      %p142 = scmp.ne.s32.totalorder %s128, %s129
      %p143 = scmp.eq.s32.totalorder %s27, 1
      %p144 = por %p142, %p143
      %p146 = scmp.ne.s32.totalorder %s129, %s145
      %p147 = scmp.eq.s32.totalorder %s27, 0
      %p148 = por %p146, %p147
      %p149 = scmp.le.s32.totalorder 1, %s21
      %p150 = scmp.lt.s32.totalorder %s21, 3
      %p151 = pnand %p149, %p150
      %p152 = pneg %p151
      // Predicated region
      $region9: #{_host_step.1} parent=5 // pred_check
        _
      $region10: #{_host_step.1} parent=5 // pred_check_branch
        %154 = sbr.rel (%p151) target = $region12
      $region11: #{_host_step.1} parent=5 // pred_region
        %s155 = ssub.s32 %s21, 1
      $region12: #{_host_step.1} parent=5 // pred_fallthru
        _
      %p156 = scmp.lt.s32.totalorder %s21, 2
      // Predicated region
      $region13: #{_host_step.1} parent=5 // pred_check
        %p157 = pneg %p156
      $region14: #{_host_step.1} parent=5 // pred_check_branch
        %159 = sbr.rel (%p157) target = $region16
      $region15: #{_host_step.1} parent=5 // pred_region
        // Predicated region
        $region17: #{_host_step.1} parent=15 // pred_check
          %p160 = pneg %p55
        $region18: #{_host_step.1} parent=15 // pred_check_branch
          %162 = sbr.rel (%p160) target = $region20
        $region19: #{_host_step.1} parent=15 // pred_region
          %s163 = sand.u32 %s45, 1
          %s164 = scalar_lea.sflag [#allocation10], %s163
          %s165 = sand.u32 %s45, 1
          %s166 = smul.addr %s165, 256
          %s167 = scalar_lea.vmem [#allocation9], %s166
          %s168 = sadd.s32 %s28, %s29
          %s170 = ssub.s32 4096, 4096
          %171 = vsyncadd %s164, %s170
          %s172 = smul.addr %s168, 64
          %s173 = smul.addr %s172, 64
          %s174 = scalar_lea.hbm %s2, %s173
          %s175 = sshll.u32 %s167, 4
          %s176 = int_to_ptr.vmem [resolvable:$true] %s175
          %181 = dma.hbm_to_vmem [thread:$0]  %s174, 4096, %s176, %s164, 128, 128, 8
        $region20: #{_host_step.1} parent=15 // pred_fallthru
          _
        // Predicated region
        $region21: #{_host_step.1} parent=15 // pred_check
          %p182 = pneg %p83
        $region22: #{_host_step.1} parent=15 // pred_check_branch
          %184 = sbr.rel (%p182) target = $region24
        $region23: #{_host_step.1} parent=15 // pred_region
          %s185 = sadd.s32 %s28, %s29
          %p186 = scmp.lt.s32.totalorder %s185, 1
          %s187 = scalar_select %p186, %s185, 1
          %s188 = smul.addr %s187, 2
          %s189 = scalar_lea.vmem %s3, %s188
          %s190 = sadd.s32 %s28, %s29
        $region24: #{_host_step.1} parent=15 // pred_fallthru
          _
      $region16: #{_host_step.1} parent=5 // pred_fallthru
        _
      %p191 = scmp.le.s32.totalorder 1, %s21
      %p192 = scmp.lt.s32.totalorder %s21, 3
      %p193 = pnand %p191, %p192
      %p194 = pneg %p193
      // Predicated region
      $region25: #{_host_step.1} parent=5 // pred_check
        _
      $region26: #{_host_step.1} parent=5 // pred_check_branch
        %196 = sbr.rel (%p193) target = $region28
      $region27: #{_host_step.1} parent=5 // pred_region
        %s197 = ssub.s32 %s21, 1
        %s198 = sand.u32 %s48, 1
        %s199 = scalar_lea.sflag [#allocation10], %s198
        %s200 = sand.u32 %s48, 1
        %s201 = smul.addr %s200, 256
        %s202 = scalar_lea.vmem [#allocation9], %s201
        // Predicated region
        $region29: #{_host_step.1} parent=27 // pred_check
          %p203 = pneg %p61
        $region30: #{_host_step.1} parent=27 // pred_check_branch
          %205 = sbr.rel (%p203) target = $region32
        $region31: #{_host_step.1} parent=27 // pred_region
          %206 = dma.done %s199, 4096
        $region32: #{_host_step.1} parent=27 // pred_fallthru
          _
        %s207 = sand.u32 %s48, 1
        %s208 = scalar_lea.sflag [#allocation10], %s207
        %s209 = sand.u32 %s48, 1
        %s210 = smul.addr %s209, 256
        %s211 = scalar_lea.vmem [#allocation9], %s210
        %p212 = pneg %p61
        %p213 = pneg %p58
        %s214 = sadd.s32 %s30, %s31
        %p215 = scmp.lt.s32.totalorder %s214, 1
        %s216 = scalar_select %p215, %s214, 1
        %s217 = smul.addr %s216, 2
        %s218 = scalar_lea.vmem %s3, %s217
        %p219 = pneg %p89
        %p220 = pneg %p86
        %p221 = pneg %p115
        %p222 = pneg %p112
        %p223 = scmp.lt.s32.totalorder %s30, 1
        %s224 = scalar_select %p223, %s30, 1
        %s225 = smul.addr %s224, 8
        %s226 = scalar_lea.vmem %s4, %s225
        %p227 = pneg %p141
        %p228 = pneg %p138
        %p229 = scmp.lt.s32.totalorder %s30, 1
        %s230 = scalar_select %p229, %s30, 1
        %s231 = smul.addr %s230, 8
        %s232 = scalar_lea.vmem %s5, %s231
        %s233 = sadd.s32 %s30, %s31
        %s234 = sadd.s32 %s30, %s31
        %p235 = scmp.lt.s32.totalorder %s234, 1
        %s236 = scalar_select %p235, %s234, 1
        %s237 = smul.addr %s236, 2
        %s238 = scalar_lea.vmem %s3, %s237
        %s239 = sadd.s32 %s30, %s31
        %p240 = scmp.lt.s32.totalorder %s30, 1
        %s241 = scalar_select %p240, %s30, 1
        %s242 = smul.addr %s241, 8
        %s243 = scalar_lea.vmem %s4, %s242
        %p244 = scmp.lt.s32.totalorder %s30, 1
        %s245 = scalar_select %p244, %s30, 1
        %s246 = smul.addr %s245, 8
        %s247 = scalar_lea.vmem %s5, %s246
        %p248 = scmp.eq.s32.totalorder %s31, 0
        // Predicated region
        $region33: #{_host_step.1} parent=27 // pred_check
          %p249 = pneg %p248
        $region34: #{_host_step.1} parent=27 // pred_check_branch
          %251 = sbr.rel (%p249) target = $region36
        $region35: #{_host_step.1} parent=27 // pred_region
          %vm252 = vcmask 7168
          %253 = vst.msk [vmem:[#allocation4] sm:$0xff] %vm252, -inf
          %254 = vst.msk [vmem:[#allocation5] sm:$0xff] %vm252, 0
          %s255 = sld [smem:[#allocation8]]
          %s256 = sshrl.u32 %s255, 3
          %s257 = sand.u32 %s255, 7
          %s258 = smul.u32 %s256, 16
          %s259 = sadd.s32 %s257, %s258
          %s260 = smul.addr %s259, 16
          %s261 = scalar_lea.hbm %s1, %s260
          %s263 = sshll.u32 [#allocation2], 4
          %s264 = int_to_ptr.vmem [resolvable:$true] %s263
          %266 = dma.hbm_to_vmem [thread:$0]  %s261, 32, %s264, [#allocation6], 128, 128, 1
          %s267 = sld [smem:[#allocation8 + $0x1]]
          %s268 = sshrl.u32 %s267, 3
          %s269 = sand.u32 %s267, 7
          %s270 = smul.u32 %s268, 16
          %s271 = sadd.s32 %s269, %s270
          %s272 = smul.addr %s271, 16
          %s273 = scalar_lea.hbm %s1, %s272
          %s274 = scalar_lea.vmem [#allocation2], 1
          %s275 = scalar_lea.sflag [#allocation6], 1
          %s277 = sshll.u32 %s274, 4
          %s278 = int_to_ptr.vmem [resolvable:$true] %s277
          %280 = dma.hbm_to_vmem [thread:$0]  %s273, 32, %s278, %s275, 128, 128, 1
          %s281 = sld [smem:[#allocation8 + $0x2]]
          %s282 = sshrl.u32 %s281, 3
          %s283 = sand.u32 %s281, 7
          %s284 = smul.u32 %s282, 16
          %s285 = sadd.s32 %s283, %s284
          %s286 = smul.addr %s285, 16
          %s287 = scalar_lea.hbm %s1, %s286
          %s288 = scalar_lea.vmem [#allocation2], 2
          %s289 = scalar_lea.sflag [#allocation6], 2
          %s291 = sshll.u32 %s288, 4
          %s292 = int_to_ptr.vmem [resolvable:$true] %s291
          %294 = dma.hbm_to_vmem [thread:$0]  %s287, 32, %s292, %s289, 128, 128, 1
          %s295 = sld [smem:[#allocation8 + $0x3]]
          %s296 = sshrl.u32 %s295, 3
          %s297 = sand.u32 %s295, 7
          %s298 = smul.u32 %s296, 16
          %s299 = sadd.s32 %s297, %s298
          %s300 = smul.addr %s299, 16
          %s301 = scalar_lea.hbm %s1, %s300
          %s302 = scalar_lea.vmem [#allocation2], 3
          %s303 = scalar_lea.sflag [#allocation6], 3
          %s305 = sshll.u32 %s302, 4
          %s306 = int_to_ptr.vmem [resolvable:$true] %s305
          %308 = dma.hbm_to_vmem [thread:$0]  %s301, 32, %s306, %s303, 128, 128, 1
          %s309 = sld [smem:[#allocation8 + $0x4]]
          %s310 = sshrl.u32 %s309, 3
          %s311 = sand.u32 %s309, 7
          %s312 = smul.u32 %s310, 16
          %s313 = sadd.s32 %s311, %s312
          %s314 = smul.addr %s313, 16
          %s315 = scalar_lea.hbm %s1, %s314
          %s316 = scalar_lea.vmem [#allocation2], 4
          %s317 = scalar_lea.sflag [#allocation6], 4
          %s319 = sshll.u32 %s316, 4
          %s320 = int_to_ptr.vmem [resolvable:$true] %s319
          %322 = dma.hbm_to_vmem [thread:$0]  %s315, 32, %s320, %s317, 128, 128, 1
          %s323 = sld [smem:[#allocation8 + $0x5]]
          %s324 = sshrl.u32 %s323, 3
          %s325 = sand.u32 %s323, 7
          %s326 = smul.u32 %s324, 16
          %s327 = sadd.s32 %s325, %s326
          %s328 = smul.addr %s327, 16
          %s329 = scalar_lea.hbm %s1, %s328
          %s330 = scalar_lea.vmem [#allocation2], 5
          %s331 = scalar_lea.sflag [#allocation6], 5
          %s333 = sshll.u32 %s330, 4
          %s334 = int_to_ptr.vmem [resolvable:$true] %s333
          %336 = dma.hbm_to_vmem [thread:$0]  %s329, 32, %s334, %s331, 128, 128, 1
          %s337 = sld [smem:[#allocation8 + $0x6]]
          %s338 = sshrl.u32 %s337, 3
          %s339 = sand.u32 %s337, 7
          %s340 = smul.u32 %s338, 16
          %s341 = sadd.s32 %s339, %s340
          %s342 = smul.addr %s341, 16
          %s343 = scalar_lea.hbm %s1, %s342
          %s344 = scalar_lea.vmem [#allocation2], 6
          %s345 = scalar_lea.sflag [#allocation6], 6
          %s347 = sshll.u32 %s344, 4
          %s348 = int_to_ptr.vmem [resolvable:$true] %s347
          %350 = dma.hbm_to_vmem [thread:$0]  %s343, 32, %s348, %s345, 128, 128, 1
          %s351 = sld [smem:[#allocation8 + $0x7]]
          %s352 = sshrl.u32 %s351, 3
          %s353 = sand.u32 %s351, 7
          %s354 = smul.u32 %s352, 16
          %s355 = sadd.s32 %s353, %s354
          %s356 = smul.addr %s355, 16
          %s357 = scalar_lea.hbm %s1, %s356
          %s358 = scalar_lea.vmem [#allocation2], 7
          %s359 = scalar_lea.sflag [#allocation6], 7
          %s361 = sshll.u32 %s358, 4
          %s362 = int_to_ptr.vmem [resolvable:$true] %s361
          %364 = dma.hbm_to_vmem [thread:$0]  %s357, 32, %s362, %s359, 128, 128, 1
          %s365 = sld [smem:[#allocation8]]
          %s366 = smul.u32 1, 2
          %s367 = sshll.u32 %s366, 4
          %368 = dma.done [#allocation6], %s367
          %s369 = sld [smem:[#allocation8 + $0x1]]
          %s370 = sshll.u32 %s366, 4
          %371 = dma.done %s275, %s370
          %s372 = sld [smem:[#allocation8 + $0x2]]
          %s373 = sshll.u32 %s366, 4
          %374 = dma.done %s289, %s373
          %s375 = sld [smem:[#allocation8 + $0x3]]
          %s376 = sshll.u32 %s366, 4
          %377 = dma.done %s303, %s376
          %s378 = sld [smem:[#allocation8 + $0x4]]
          %s379 = sshll.u32 %s366, 4
          %380 = dma.done %s317, %s379
          %s381 = sld [smem:[#allocation8 + $0x5]]
          %s382 = sshll.u32 %s366, 4
          %383 = dma.done %s331, %s382
          %s384 = sld [smem:[#allocation8 + $0x6]]
          %s385 = sshll.u32 %s366, 4
          %386 = dma.done %s345, %s385
          %s387 = sld [smem:[#allocation8 + $0x7]]
          %s388 = sshll.u32 %s366, 4
          %389 = dma.done %s359, %s388
          %v390 = vld [vmem:[#allocation2] sm:$0xff]
          %v391 = vld [vmem:[#allocation2 + $0x8] sm:$0xff]
          %v392 = vpack.c.bf16 %v390, %v390
          %v393 = vpack.c.bf16 %v391, %v391
          %v396 = vunpack.c.l.b16 %v392
          %v397 = vunpack.c.l.b16 %v393
          %v398 = vpack.c.b16 %v397, %v396
          %400 = vst [vmem:[#allocation3] sm:$0xff] %v398
        $region36: #{_host_step.1} parent=27 // pred_fallthru
          _
        %v401 = vld [vmem:[#allocation3] sm:$0xff]
        %v402 = vld [vmem:[%s202] sm:$0xff]
        %v403 = vld [vmem:[%s202 + $0x8] sm:$0xff]
        %v404 = vld [vmem:[%s202 + $0x10] sm:$0xff]
        %v405 = vld [vmem:[%s202 + $0x18] sm:$0xff]
        %v406 = vld [vmem:[%s202 + $0x20] sm:$0xff]
        %v407 = vld [vmem:[%s202 + $0x28] sm:$0xff]
        %v408 = vld [vmem:[%s202 + $0x30] sm:$0xff]
        %v409 = vld [vmem:[%s202 + $0x38] sm:$0xff]
        %v410 = vld [vmem:[%s202 + $0x40] sm:$0xff]
        %v411 = vld [vmem:[%s202 + $0x48] sm:$0xff]
        %v412 = vld [vmem:[%s202 + $0x50] sm:$0xff]
        %v413 = vld [vmem:[%s202 + $0x58] sm:$0xff]
        %v414 = vld [vmem:[%s202 + $0x60] sm:$0xff]
        %v415 = vld [vmem:[%s202 + $0x68] sm:$0xff]
        %v416 = vld [vmem:[%s202 + $0x70] sm:$0xff]
        %v417 = vld [vmem:[%s202 + $0x78] sm:$0xff]
        %v418 = vld [vmem:[%s202 + $0x80] sm:$0xff]
        %v419 = vld [vmem:[%s202 + $0x88] sm:$0xff]
        %v420 = vld [vmem:[%s202 + $0x90] sm:$0xff]
        %v421 = vld [vmem:[%s202 + $0x98] sm:$0xff]
        %v422 = vld [vmem:[%s202 + $0xa0] sm:$0xff]
        %v423 = vld [vmem:[%s202 + $0xa8] sm:$0xff]
        %v424 = vld [vmem:[%s202 + $0xb0] sm:$0xff]
        %v425 = vld [vmem:[%s202 + $0xb8] sm:$0xff]
        %v426 = vld [vmem:[%s202 + $0xc0] sm:$0xff]
        %v427 = vld [vmem:[%s202 + $0xc8] sm:$0xff]
        %v428 = vld [vmem:[%s202 + $0xd0] sm:$0xff]
        %v429 = vld [vmem:[%s202 + $0xd8] sm:$0xff]
        %v430 = vld [vmem:[%s202 + $0xe0] sm:$0xff]
        %v431 = vld [vmem:[%s202 + $0xe8] sm:$0xff]
        %v432 = vld [vmem:[%s202 + $0xf0] sm:$0xff]
        %v433 = vld [vmem:[%s202 + $0xf8] sm:$0xff]
        %v434 = vld [vmem:[%s238] sm:$0x3]
        %v436 = vlaneseq
        %v437 = vshrl.u32 %v436, 7
        %v438 = vsub.s32 0, %v437
        %v439 = vrot.slane %v434, %v438
        %v440 = vlaneseq
        %v441 = vshrl.u32 %v440, 7
        %v442 = vsub.s32 1, %v441
        %v443 = vrot.slane %v434, %v442
        %v447 = vunpack.c.l.b16 %v401
        %v448 = vunpack.c.h.b16 %v401
        %v449 = vpack.c.b16 %v447, %v447
        %v450 = vpack.c.b16 %v448, %v448
        %v485 = vunpack.c.l.b16 %v402
        %v486 = vunpack.c.h.b16 %v402
        %v487 = vunpack.c.l.b16 %v403
        %v488 = vunpack.c.h.b16 %v403
        %v489 = vunpack.c.l.b16 %v404
        %v490 = vunpack.c.h.b16 %v404
        %v491 = vunpack.c.l.b16 %v405
        %v492 = vunpack.c.h.b16 %v405
        %v493 = vunpack.c.l.b16 %v406
        %v494 = vunpack.c.h.b16 %v406
        %v495 = vunpack.c.l.b16 %v407
        %v496 = vunpack.c.h.b16 %v407
        %v497 = vunpack.c.l.b16 %v408
        %v498 = vunpack.c.h.b16 %v408
        %v499 = vunpack.c.l.b16 %v409
        %v500 = vunpack.c.h.b16 %v409
        %v501 = vunpack.c.l.b16 %v410
        %v502 = vunpack.c.h.b16 %v410
        %v503 = vunpack.c.l.b16 %v411
        %v504 = vunpack.c.h.b16 %v411
        %v505 = vunpack.c.l.b16 %v412
        %v506 = vunpack.c.h.b16 %v412
        %v507 = vunpack.c.l.b16 %v413
        %v508 = vunpack.c.h.b16 %v413
        %v509 = vunpack.c.l.b16 %v414
        %v510 = vunpack.c.h.b16 %v414
        %v511 = vunpack.c.l.b16 %v415
        %v512 = vunpack.c.h.b16 %v415
        %v513 = vunpack.c.l.b16 %v416
        %v514 = vunpack.c.h.b16 %v416
        %v515 = vunpack.c.l.b16 %v417
        %v516 = vunpack.c.h.b16 %v417
        %v517 = vunpack.c.l.b16 %v418
        %v518 = vunpack.c.h.b16 %v418
        %v519 = vunpack.c.l.b16 %v419
        %v520 = vunpack.c.h.b16 %v419
        %v521 = vunpack.c.l.b16 %v420
        %v522 = vunpack.c.h.b16 %v420
        %v523 = vunpack.c.l.b16 %v421
        %v524 = vunpack.c.h.b16 %v421
        %v525 = vunpack.c.l.b16 %v422
        %v526 = vunpack.c.h.b16 %v422
        %v527 = vunpack.c.l.b16 %v423
        %v528 = vunpack.c.h.b16 %v423
        %v529 = vunpack.c.l.b16 %v424
        %v530 = vunpack.c.h.b16 %v424
        %v531 = vunpack.c.l.b16 %v425
        %v532 = vunpack.c.h.b16 %v425
        %v533 = vunpack.c.l.b16 %v426
        %v534 = vunpack.c.h.b16 %v426
        %v535 = vunpack.c.l.b16 %v427
        %v536 = vunpack.c.h.b16 %v427
        %v537 = vunpack.c.l.b16 %v428
        %v538 = vunpack.c.h.b16 %v428
        %v539 = vunpack.c.l.b16 %v429
        %v540 = vunpack.c.h.b16 %v429
        %v541 = vunpack.c.l.b16 %v430
        %v542 = vunpack.c.h.b16 %v430
        %v543 = vunpack.c.l.b16 %v431
        %v544 = vunpack.c.h.b16 %v431
        %v545 = vunpack.c.l.b16 %v432
        %v546 = vunpack.c.h.b16 %v432
        %v547 = vunpack.c.l.b16 %v433
        %v548 = vunpack.c.h.b16 %v433
        %v549 = vpack.c.b16 %v487, %v485
        %v550 = vpack.c.b16 %v488, %v486
        %v551 = vpack.c.b16 %v491, %v489
        %v552 = vpack.c.b16 %v492, %v490
        %v553 = vpack.c.b16 %v495, %v493
        %v554 = vpack.c.b16 %v496, %v494
        %v555 = vpack.c.b16 %v499, %v497
        %v556 = vpack.c.b16 %v500, %v498
        %v557 = vpack.c.b16 %v503, %v501
        %v558 = vpack.c.b16 %v504, %v502
        %v559 = vpack.c.b16 %v507, %v505
        %v560 = vpack.c.b16 %v508, %v506
        %v561 = vpack.c.b16 %v511, %v509
        %v562 = vpack.c.b16 %v512, %v510
        %v563 = vpack.c.b16 %v515, %v513
        %v564 = vpack.c.b16 %v516, %v514
        %v565 = vpack.c.b16 %v519, %v517
        %v566 = vpack.c.b16 %v520, %v518
        %v567 = vpack.c.b16 %v523, %v521
        %v568 = vpack.c.b16 %v524, %v522
        %v569 = vpack.c.b16 %v527, %v525
        %v570 = vpack.c.b16 %v528, %v526
        %v571 = vpack.c.b16 %v531, %v529
        %v572 = vpack.c.b16 %v532, %v530
        %v573 = vpack.c.b16 %v535, %v533
        %v574 = vpack.c.b16 %v536, %v534
        %v575 = vpack.c.b16 %v539, %v537
        %v576 = vpack.c.b16 %v540, %v538
        %v577 = vpack.c.b16 %v543, %v541
        %v578 = vpack.c.b16 %v544, %v542
        %v579 = vpack.c.b16 %v547, %v545
        %v580 = vpack.c.b16 %v548, %v546
        %613 = vmatprep.subr.bf16.mxu0 %v550
        %614 = vmatpush1.bf16.msra.mxu0 %v549
        %615 = vmatprep.subr.bf16.mxu0 %v552
        %616 = vmatpush1.bf16.msra.mxu0 %v551
        %617 = vmatprep.subr.bf16.mxu0 %v554
        %618 = vmatpush1.bf16.msra.mxu0 %v553
        %619 = vmatprep.subr.bf16.mxu0 %v556
        %620 = vmatpush1.bf16.msra.mxu0 %v555
        %621 = vmatprep.subr.bf16.mxu0 %v558
        %622 = vmatpush1.bf16.msra.mxu0 %v557
        %623 = vmatprep.subr.bf16.mxu0 %v560
        %624 = vmatpush1.bf16.msra.mxu0 %v559
        %625 = vmatprep.subr.bf16.mxu0 %v562
        %626 = vmatpush1.bf16.msra.mxu0 %v561
        %627 = vmatprep.subr.bf16.mxu0 %v564
        %628 = vmatpush1.bf16.msra.mxu0 %v563
        %629 = vmatprep.subr.bf16.mxu0 %v566
        %630 = vmatpush1.bf16.msra.mxu0 %v565
        %631 = vmatprep.subr.bf16.mxu0 %v568
        %632 = vmatpush1.bf16.msra.mxu0 %v567
        %633 = vmatprep.subr.bf16.mxu0 %v570
        %634 = vmatpush1.bf16.msra.mxu0 %v569
        %635 = vmatprep.subr.bf16.mxu0 %v572
        %636 = vmatpush1.bf16.msra.mxu0 %v571
        %637 = vmatprep.subr.bf16.mxu0 %v574
        %638 = vmatpush1.bf16.msra.mxu0 %v573
        %639 = vmatprep.subr.bf16.mxu0 %v576
        %640 = vmatpush1.bf16.msra.mxu0 %v575
        %641 = vmatprep.subr.bf16.mxu0 %v578
        %642 = vmatpush1.bf16.msra.mxu0 %v577
        %643 = vmatprep.subr.bf16.mxu0 %v580
        %644 = vmatpush1.bf16.msra.mxu0 %v579
        %645 = vmatprep.mubr.bf16.mxu0 %v450
        %646 = vmatmul.mubr.bf16.gmra.mrb[0].mxu0 %v449
        %v647 = vpop.f32.mrb[0].mxu0
        %v648 = vadd.f32 %v439, %v647
        %v649 = vpop.f32.mrb[0].mxu0
        %v650 = vadd.f32 %v443, %v649
        %v651 = vpop.f32.mrb[0].mxu0
        %v652 = vpop.f32.mrb[0].mxu0
        %653 = vdwg.mxu0
        %v654 = vmax.f32 %v648, %v650
        %655 = vmax.xlane.f32.xlu0 %v654
        %v656 = vpop.xlane.xlu0 %655
        %v657 = vlaneseq
        %v658 = vand.u32 %v657, 127
        %v659 = vadd.s32 %v658, 128
        %vm660 = vcmp.eq.f32.partialorder %v648, %v656
        %vm661 = vcmp.eq.f32.partialorder %v650, %v656
        %v662 = vsel %vm660, %v658, 256
        %v663 = vsel %vm661, %v659, 256
        %vm664 = vcmp.lt.s32.totalorder %v662, %v663
        %v665 = vsel %vm664, %v662, %v663
        %v666 = vand.u32 %v665, 65535
        %v667 = vshra.s32 %v665, 16
        %v668 = vcvt.s32.f32 %v666
        %v669 = vcvt.s32.f32 %v667
        %670 = vmin.xlane.f32.xlu0 %v669
        %v671 = vpop.xlane.xlu0 %670
        %vm672 = vcmp.eq.f32.partialorder %v669, %v671
        %v673 = vsel %vm672, %v668, inf
        %674 = vmin.xlane.f32.xlu0 %v673
        %v675 = vpop.xlane.xlu0 %674
        %v676 = vcvt.f32.s32 %v675
        %v677 = vcvt.f32.s32 %v671
        %v678 = vshll.u32 %v677, 16
        %v679 = vadd.s32 %v678, %v676
        %s680 = sadd.s32 %s30, %s31
        %s681 = smul.u32 %s680, 256
        %v682 = vstv %s681
        %v683 = vadd.s32 %v679, %v682
        %v684 = vld [vmem:[#allocation4] sm:$0xff]
        %vm685 = vcmp.gt.f32.partialorder %v656, %v684
        %v686 = vld [vmem:[#allocation5] sm:$0xff]
        %v687 = vsel %vm685, %v683, %v686
        %vm688 = vcmask 7168
        %689 = vst.msk [vmem:[#allocation5] sm:$0xff] %vm688, %v687
        %v690 = vld [vmem:[#allocation4] sm:$0xff]
        %v691 = vsel %vm685, %v656, %v690
        %692 = vst.msk [vmem:[#allocation4] sm:$0xff] %vm688, %v691
        // Predicated region
        $region37: #{_host_step.1} parent=27 // pred_check
          %p693 = pneg %p248
        $region38: #{_host_step.1} parent=27 // pred_check_branch
          %695 = sbr.rel (%p693) target = $region40
        $region39: #{_host_step.1} parent=27 // pred_region
          %v696 = vld [vmem:[#allocation4] sm:$0xff]
          %697 = vst.msk [vmem:[%s243] sm:$0xff] %vm688, %v696
          %v698 = vld [vmem:[#allocation5] sm:$0xff]
          %699 = vst.msk [vmem:[%s247] sm:$0xff] %vm688, %v698
        $region40: #{_host_step.1} parent=27 // pred_fallthru
          _
        %p700 = scmp.lt.s32.totalorder %s30, 1
        %s701 = scalar_select %p700, %s30, 1
        %s702 = smul.addr %s701, 8
        %s703 = scalar_lea.vmem %s4, %s702
        %p704 = scmp.lt.s32.totalorder %s30, 1
        %s705 = scalar_select %p704, %s30, 1
        %s706 = smul.addr %s705, 8
        %s707 = scalar_lea.vmem %s5, %s706
        // Predicated region
        $region41: #{_host_step.1} parent=27 // pred_check
          %p708 = pneg %p112
        $region42: #{_host_step.1} parent=27 // pred_check_branch
          %710 = sbr.rel (%p708) target = $region44
        $region43: #{_host_step.1} parent=27 // pred_region
          _
        $region44: #{_host_step.1} parent=27 // pred_fallthru
          _
        // Predicated region
        $region45: #{_host_step.1} parent=27 // pred_check
          %p711 = pneg %p138
        $region46: #{_host_step.1} parent=27 // pred_check_branch
          %713 = sbr.rel (%p711) target = $region48
        $region47: #{_host_step.1} parent=27 // pred_region
          _
        $region48: #{_host_step.1} parent=27 // pred_fallthru
          _
      $region28: #{_host_step.1} parent=5 // pred_fallthru
        _
      %p714 = scmp.le.s32.totalorder 2, %s21
      // Predicated region
      $region49: #{_host_step.1} parent=5 // pred_check
        %p715 = pneg %p714
      $region50: #{_host_step.1} parent=5 // pred_check_branch
        %717 = sbr.rel (%p715) target = $region52
      $region51: #{_host_step.1} parent=5 // pred_region
        %s718 = ssub.s32 %s21, 2
        // Predicated region
        $region53: #{_host_step.1} parent=51 // pred_check
          %p719 = pneg %p118
        $region54: #{_host_step.1} parent=51 // pred_check_branch
          %721 = sbr.rel (%p719) target = $region56
        $region55: #{_host_step.1} parent=51 // pred_region
          %p722 = scmp.lt.s32.totalorder %s32, 1
          %s723 = scalar_select %p722, %s32, 1
          %s724 = smul.addr %s723, 8
          %s725 = scalar_lea.vmem %s4, %s724
        $region56: #{_host_step.1} parent=51 // pred_fallthru
          _
        // Predicated region
        $region57: #{_host_step.1} parent=51 // pred_check
          %p726 = pneg %p144
        $region58: #{_host_step.1} parent=51 // pred_check_branch
          %728 = sbr.rel (%p726) target = $region60
        $region59: #{_host_step.1} parent=51 // pred_region
          %p729 = scmp.lt.s32.totalorder %s32, 1
          %s730 = scalar_select %p729, %s32, 1
          %s731 = smul.addr %s730, 8
          %s732 = scalar_lea.vmem %s5, %s731
        $region60: #{_host_step.1} parent=51 // pred_fallthru
          _
      $region52: #{_host_step.1} parent=5 // pred_fallthru
        _
    $region6: #{_host_step.1} parent=1 // loop_footer
      %s25 = sadd.s32 1, %s21
    $region7: #{_host_step.1} parent=1 // loop_footer_branch
      %20 = sbr.rel target = $region3
    $region8: #{_host_step.1} parent=1 // loop_exit
      _
    %733 = vsyncpa [#allocation10], 1
    %s734 = scalar_lea.sflag [#allocation10], 1
    %735 = vsyncpa %s734, 1
  %736 = vsyncmov [#allocation6]
  %s737 = vpop.sfrf %736
  %p738 = scmp.eq.s32.totalorder %s737, 0
  %p739 = pneg %p738
  %741 = shalt.err (%p739)
  %s742 = scalar_lea.sflag [#allocation6], 1
  %743 = vsyncmov %s742
  %s744 = vpop.sfrf %743
  %p745 = scmp.eq.s32.totalorder %s744, 0
  %p746 = pneg %p745
  %748 = shalt.err (%p746)
  %s749 = scalar_lea.sflag [#allocation6], 2
  %750 = vsyncmov %s749
  %s751 = vpop.sfrf %750
  %p752 = scmp.eq.s32.totalorder %s751, 0
  %p753 = pneg %p752
  %755 = shalt.err (%p753)
  %s756 = scalar_lea.sflag [#allocation6], 3
  %757 = vsyncmov %s756
  %s758 = vpop.sfrf %757
  %p759 = scmp.eq.s32.totalorder %s758, 0
  %p760 = pneg %p759
  %762 = shalt.err (%p760)
  %s763 = scalar_lea.sflag [#allocation6], 4
  %764 = vsyncmov %s763
  %s765 = vpop.sfrf %764
  %p766 = scmp.eq.s32.totalorder %s765, 0
  %p767 = pneg %p766
  %769 = shalt.err (%p767)
  %s770 = scalar_lea.sflag [#allocation6], 5
  %771 = vsyncmov %s770
  %s772 = vpop.sfrf %771
  %p773 = scmp.eq.s32.totalorder %s772, 0
  %p774 = pneg %p773
  %776 = shalt.err (%p774)
  %s777 = scalar_lea.sflag [#allocation6], 6
  %778 = vsyncmov %s777
  %s779 = vpop.sfrf %778
  %p780 = scmp.eq.s32.totalorder %s779, 0
  %p781 = pneg %p780
  %783 = shalt.err (%p781)
  %s784 = scalar_lea.sflag [#allocation6], 7
  %785 = vsyncmov %s784
  %s786 = vpop.sfrf %785
  %p787 = scmp.eq.s32.totalorder %s786, 0
  %p788 = pneg %p787
  %790 = shalt.err (%p788)

</llo_original>
